<compile_context>
chip_gen: v7x
topology: tpu7x:2x2x1
jax: 0.10.0
libtpu: 0.0.40
codegen_flags: <defaults>
</compile_context>

<pallas_src>
import functools

import jax
import jax.numpy as jnp
from jax.experimental import pallas as pl
from jax.experimental.pallas import tpu as pltpu


def _fused_conv_bn_act_kernel(w_ref, b_ref, x_ref, o_ref, *, ksize, wp, l_out, act):
    """Fused im2col + matmul + BN-bias + activation for one image / Cout tile.

    w_ref: (kh*kw, Cout_t, Cin)  bf16, BN scale folded in, VMEM-resident
    b_ref: (Cout_t, 1)           f32 folded BN bias
    x_ref: (1, Cin, Hp*Wp)       bf16 padded image, spatial dims flattened
    o_ref: (1, Cout_t, L)        output in padded-flat coordinates
    """
    x = x_ref[0]                                       # (Cin, Hp*Wp)
    cout_t = w_ref.shape[1]
    acc = jnp.zeros((cout_t, l_out), jnp.float32)
    for dy in range(ksize):                            # statically unrolled
        for dx in range(ksize):
            off = dy * wp + dx                         # static lane offset
            xk = x[:, off:off + l_out]                 # shifted window (Cin, L)
            acc += jnp.dot(w_ref[dy * ksize + dx], xk,
                           preferred_element_type=jnp.float32)
    y = acc + b_ref[...]                               # BN bias (scale in weights)
    if act == "silu":
        y = y * jax.nn.sigmoid(y)
    elif act == "relu":
        y = jnp.maximum(y, 0.0)
    elif act == "lrelu":
        y = jnp.where(y > 0, y, 0.1 * y)
    else:
        raise AttributeError("Unsupported act type: {}".format(act))
    o_ref[0] = y.astype(o_ref.dtype)


def base_conv_forward(x_nchw, weight, gamma, beta, running_mean, running_var,
                      *, ksize, stride, eps=1e-3, act="silu",
                      out_dtype=jnp.float32):
    """Forward of BaseConv. x_nchw: (N, Cin, H, W). weight: (Cout, Cin, kh, kw)."""
    pad = (ksize - 1) // 2
    n, cin, h, w = x_nchw.shape
    cout = weight.shape[0]
    hp, wp = h + 2 * pad, w + 2 * pad
    ho = (hp - ksize) // stride + 1
    wo = (wp - ksize) // stride + 1
    # Number of anchor positions whose full kh*kw window stays in-bounds when
    # spatial dims are flattened in padded coordinates.
    l_out = hp * wp - (ksize - 1) * (wp + 1)

    # ---- the only lhs-side wrapper pass: spatial pad + bf16 cast -----------
    xp = jnp.pad(x_nchw, ((0, 0), (0, 0), (pad, pad), (pad, pad)))
    xp = xp.astype(jnp.bfloat16).reshape(n, cin, hp * wp)

    # ---- fold BN (inference semantics) into weights + per-channel bias -----
    inv_std = 1.0 / jnp.sqrt(running_var.astype(jnp.float32) + eps)
    scale = gamma.astype(jnp.float32) * inv_std                    # (Cout,)
    bias = beta.astype(jnp.float32) - running_mean.astype(jnp.float32) * scale
    # (Cout, Cin, kh, kw) -> (kh*kw, Cout, Cin), BN scale folded in, bf16 MXU in
    wk = jnp.transpose(weight.astype(jnp.float32) * scale[:, None, None, None],
                       (2, 3, 0, 1)).reshape(ksize * ksize, cout, cin)
    wk = wk.astype(jnp.bfloat16)
    bias2d = bias.reshape(cout, 1)

    # ---- Cout tiling: MXU-native 256 when it divides, else whole Cout ------
    tco = 256 if (cout % 256 == 0) else cout
    n_co = cout // tco
    grid = (n, n_co)                                   # both parallel axes

    # ---- VMEM budget (inputs/outputs double-buffered by the pipeline) ------
    out_itemsize = jnp.dtype(out_dtype).itemsize
    vmem_bytes = (2 * cin * hp * wp * 2                # padded image (bf16)
                  + 2 * ksize * ksize * cout * cin * 2  # resident weights
                  + 2 * cout * 4                        # bias
                  + 2 * tco * l_out * out_itemsize      # output tiles
                  + tco * l_out * 4)                    # f32 accumulator
    vmem_limit = int(min(48 * 2**20, max(8 * 2**20, vmem_bytes + 2 * 2**20)))

    kernel = functools.partial(_fused_conv_bn_act_kernel,
                               ksize=ksize, wp=wp, l_out=l_out, act=act)

    out_flat = pl.pallas_call(
        kernel,
        out_shape=jax.ShapeDtypeStruct((n, cout, l_out), out_dtype),
        grid_spec=pltpu.PrefetchScalarGridSpec(
            num_scalar_prefetch=0,
            grid=grid,
            in_specs=[
                pl.BlockSpec((ksize * ksize, tco, cin), lambda b, co: (0, co, 0)),
                pl.BlockSpec((tco, 1), lambda b, co: (co, 0)),
                pl.BlockSpec((1, cin, hp * wp), lambda b, co: (b, 0, 0)),
            ],
            out_specs=pl.BlockSpec((1, tco, l_out), lambda b, co: (b, co, 0)),
        ),
        compiler_params=pltpu.CompilerParams(
            dimension_semantics=("parallel", "parallel"),
            vmem_limit_bytes=vmem_limit),
    )(wk, bias2d, xp)

    # ---- extract valid (strided) anchor positions; reshape is free ---------
    out_full = jnp.pad(out_flat, ((0, 0), (0, 0), (0, hp * wp - l_out)))
    out_full = out_full.reshape(n, cout, hp, wp)
    out = out_full[:, :, :(ho - 1) * stride + 1:stride,
                         :(wo - 1) * stride + 1:stride]
    return out                                          # (N, Cout, Ho, Wo)


def reference_forward(x_nchw, weight, gamma, beta, running_mean, running_var,
                      *, ksize, stride, eps=1e-3):
    """Pure-JAX f32 reference (lax conv) for correctness check."""
    pad = (ksize - 1) // 2
    y = jax.lax.conv_general_dilated(
        x_nchw.astype(jnp.float32), weight.astype(jnp.float32),
        window_strides=(stride, stride),
        padding=((pad, pad), (pad, pad)),
        dimension_numbers=("NCHW", "OIHW", "NCHW"))
    inv_std = 1.0 / jnp.sqrt(running_var + eps)
    scale = (gamma * inv_std)[None, :, None, None]
    bias = (beta - running_mean * gamma * inv_std)[None, :, None, None]
    y = y * scale + bias
    return y * jax.nn.sigmoid(y)


if __name__ == "__main__":
    # BaseConv(in_channels=4, out_channels=8, ksize=3, stride=1, act='silu')
    N, CIN, H, W = 2, 4, 16, 16
    COUT, KSIZE, STRIDE = 8, 3, 1

    key = jax.random.PRNGKey(0)
    k_x, k_w, k_g, k_b, k_m, k_v = jax.random.split(key, 6)

    x = jax.random.normal(k_x, (N, CIN, H, W), dtype=jnp.float32)
    weight = 0.1 * jax.random.normal(k_w, (COUT, CIN, KSIZE, KSIZE), dtype=jnp.float32)
    gamma = 1.0 + 0.1 * jax.random.normal(k_g, (COUT,), dtype=jnp.float32)
    beta = 0.1 * jax.random.normal(k_b, (COUT,), dtype=jnp.float32)
    running_mean = 0.1 * jax.random.normal(k_m, (COUT,), dtype=jnp.float32)
    running_var = jnp.abs(1.0 + 0.1 * jax.random.normal(k_v, (COUT,), dtype=jnp.float32))

    fwd = functools.partial(base_conv_forward, ksize=KSIZE, stride=STRIDE)
    out = jax.jit(fwd)(x, weight, gamma, beta, running_mean, running_var)
    out = jax.block_until_ready(out)

    ref = reference_forward(x, weight, gamma, beta, running_mean, running_var,
                            ksize=KSIZE, stride=STRIDE)
    assert out.shape == (N, COUT, H, W), out.shape
    # bf16 MXU inputs with f32 accumulation -> loosened tolerance vs f32 reference
    max_err = float(jnp.max(jnp.abs(out - ref)))
    assert jnp.allclose(out, ref, atol=2e-2, rtol=2e-2), max_err

    print("KERNEL_OK")
</pallas_src>

<mosaic_0001>
module attributes {stable_mosaic.version = 11 : i64} {
  func.func @_fused_conv_bn_act_kernel(%arg0: i32, %arg1: i32, %arg2: memref<9x8x4xbf16, #tpu.memory_space<vmem>>, %arg3: memref<8x1xf32, #tpu.memory_space<vmem>>, %arg4: memref<1x4x324xbf16, #tpu.memory_space<vmem>>, %arg5: memref<1x8x286xf32, #tpu.memory_space<vmem>>) attributes {dimension_semantics = [#tpu.dimension_semantics<parallel>, #tpu.dimension_semantics<parallel>], iteration_bounds = array<i64: 2, 1>, scalar_prefetch = 0 : i64, scratch_operands = 0 : i64, tpu.core_type = #tpu.core_type<tc>, window_params = [{transform_indices = @transform_0, window_bounds = array<i64: 9, 8, 4>}, {transform_indices = @transform_1, window_bounds = array<i64: 8, 1>}, {transform_indices = @transform_2, window_bounds = array<i64: 1, 4, 324>}, {transform_indices = @transform_3, window_bounds = array<i64: 1, 8, 286>}]} {
    %c0 = arith.constant 0 : index
    %c0_0 = arith.constant 0 : index
    %c0_1 = arith.constant 0 : index
    %0 = vector.load %arg4[%c0, %c0_0, %c0_1] : memref<1x4x324xbf16, #tpu.memory_space<vmem>>, vector<1x4x324xbf16>
    %1 = vector.shape_cast %0 : vector<1x4x324xbf16> to vector<4x324xbf16>
    %cst = arith.constant 0.000000e+00 : f32
    %2 = vector.broadcast %cst : f32 to vector<8x286xf32>
    %3 = vector.extract_strided_slice %1 {offsets = [0, 0], sizes = [4, 286], strides = [1, 1]} : vector<4x324xbf16> to vector<4x286xbf16>
    %c0_2 = arith.constant 0 : index
    %c0_3 = arith.constant 0 : index
    %c0_4 = arith.constant 0 : index
    %4 = vector.load %arg2[%c0_2, %c0_3, %c0_4] : memref<9x8x4xbf16, #tpu.memory_space<vmem>>, vector<1x8x4xbf16>
    %5 = vector.shape_cast %4 : vector<1x8x4xbf16> to vector<8x4xbf16>
    %cst_5 = arith.constant dense<0.000000e+00> : vector<8x286xf32>
    %6 = tpu.matmul %5, %3, %cst_5 {dimension_numbers = #tpu.dot_dimension_numbers<[1], [0], [0], [1], [0, 0, 1, 1], [], []>} : vector<8x4xbf16>, vector<4x286xbf16>, vector<8x286xf32> -> vector<8x286xf32>
    %7 = arith.addf %2, %6 : vector<8x286xf32>
    %8 = vector.extract_strided_slice %1 {offsets = [0, 1], sizes = [4, 286], strides = [1, 1]} : vector<4x324xbf16> to vector<4x286xbf16>
    %c1 = arith.constant 1 : index
    %c0_6 = arith.constant 0 : index
    %c0_7 = arith.constant 0 : index
    %9 = vector.load %arg2[%c1, %c0_6, %c0_7] : memref<9x8x4xbf16, #tpu.memory_space<vmem>>, vector<1x8x4xbf16>
    %10 = vector.shape_cast %9 : vector<1x8x4xbf16> to vector<8x4xbf16>
    %cst_8 = arith.constant dense<0.000000e+00> : vector<8x286xf32>
    %11 = tpu.matmul %10, %8, %cst_8 {dimension_numbers = #tpu.dot_dimension_numbers<[1], [0], [0], [1], [0, 0, 1, 1], [], []>} : vector<8x4xbf16>, vector<4x286xbf16>, vector<8x286xf32> -> vector<8x286xf32>
    %12 = arith.addf %7, %11 : vector<8x286xf32>
    %13 = vector.extract_strided_slice %1 {offsets = [0, 2], sizes = [4, 286], strides = [1, 1]} : vector<4x324xbf16> to vector<4x286xbf16>
    %c2 = arith.constant 2 : index
    %c0_9 = arith.constant 0 : index
    %c0_10 = arith.constant 0 : index
    %14 = vector.load %arg2[%c2, %c0_9, %c0_10] : memref<9x8x4xbf16, #tpu.memory_space<vmem>>, vector<1x8x4xbf16>
    %15 = vector.shape_cast %14 : vector<1x8x4xbf16> to vector<8x4xbf16>
    %cst_11 = arith.constant dense<0.000000e+00> : vector<8x286xf32>
    %16 = tpu.matmul %15, %13, %cst_11 {dimension_numbers = #tpu.dot_dimension_numbers<[1], [0], [0], [1], [0, 0, 1, 1], [], []>} : vector<8x4xbf16>, vector<4x286xbf16>, vector<8x286xf32> -> vector<8x286xf32>
    %17 = arith.addf %12, %16 : vector<8x286xf32>
    %18 = vector.extract_strided_slice %1 {offsets = [0, 18], sizes = [4, 286], strides = [1, 1]} : vector<4x324xbf16> to vector<4x286xbf16>
    %c3 = arith.constant 3 : index
    %c0_12 = arith.constant 0 : index
    %c0_13 = arith.constant 0 : index
    %19 = vector.load %arg2[%c3, %c0_12, %c0_13] : memref<9x8x4xbf16, #tpu.memory_space<vmem>>, vector<1x8x4xbf16>
    %20 = vector.shape_cast %19 : vector<1x8x4xbf16> to vector<8x4xbf16>
    %cst_14 = arith.constant dense<0.000000e+00> : vector<8x286xf32>
    %21 = tpu.matmul %20, %18, %cst_14 {dimension_numbers = #tpu.dot_dimension_numbers<[1], [0], [0], [1], [0, 0, 1, 1], [], []>} : vector<8x4xbf16>, vector<4x286xbf16>, vector<8x286xf32> -> vector<8x286xf32>
    %22 = arith.addf %17, %21 : vector<8x286xf32>
    %23 = vector.extract_strided_slice %1 {offsets = [0, 19], sizes = [4, 286], strides = [1, 1]} : vector<4x324xbf16> to vector<4x286xbf16>
    %c4 = arith.constant 4 : index
    %c0_15 = arith.constant 0 : index
    %c0_16 = arith.constant 0 : index
    %24 = vector.load %arg2[%c4, %c0_15, %c0_16] : memref<9x8x4xbf16, #tpu.memory_space<vmem>>, vector<1x8x4xbf16>
    %25 = vector.shape_cast %24 : vector<1x8x4xbf16> to vector<8x4xbf16>
    %cst_17 = arith.constant dense<0.000000e+00> : vector<8x286xf32>
    %26 = tpu.matmul %25, %23, %cst_17 {dimension_numbers = #tpu.dot_dimension_numbers<[1], [0], [0], [1], [0, 0, 1, 1], [], []>} : vector<8x4xbf16>, vector<4x286xbf16>, vector<8x286xf32> -> vector<8x286xf32>
    %27 = arith.addf %22, %26 : vector<8x286xf32>
    %28 = vector.extract_strided_slice %1 {offsets = [0, 20], sizes = [4, 286], strides = [1, 1]} : vector<4x324xbf16> to vector<4x286xbf16>
    %c5 = arith.constant 5 : index
    %c0_18 = arith.constant 0 : index
    %c0_19 = arith.constant 0 : index
    %29 = vector.load %arg2[%c5, %c0_18, %c0_19] : memref<9x8x4xbf16, #tpu.memory_space<vmem>>, vector<1x8x4xbf16>
    %30 = vector.shape_cast %29 : vector<1x8x4xbf16> to vector<8x4xbf16>
    %cst_20 = arith.constant dense<0.000000e+00> : vector<8x286xf32>
    %31 = tpu.matmul %30, %28, %cst_20 {dimension_numbers = #tpu.dot_dimension_numbers<[1], [0], [0], [1], [0, 0, 1, 1], [], []>} : vector<8x4xbf16>, vector<4x286xbf16>, vector<8x286xf32> -> vector<8x286xf32>
    %32 = arith.addf %27, %31 : vector<8x286xf32>
    %33 = vector.extract_strided_slice %1 {offsets = [0, 36], sizes = [4, 286], strides = [1, 1]} : vector<4x324xbf16> to vector<4x286xbf16>
    %c6 = arith.constant 6 : index
    %c0_21 = arith.constant 0 : index
    %c0_22 = arith.constant 0 : index
    %34 = vector.load %arg2[%c6, %c0_21, %c0_22] : memref<9x8x4xbf16, #tpu.memory_space<vmem>>, vector<1x8x4xbf16>
    %35 = vector.shape_cast %34 : vector<1x8x4xbf16> to vector<8x4xbf16>
    %cst_23 = arith.constant dense<0.000000e+00> : vector<8x286xf32>
    %36 = tpu.matmul %35, %33, %cst_23 {dimension_numbers = #tpu.dot_dimension_numbers<[1], [0], [0], [1], [0, 0, 1, 1], [], []>} : vector<8x4xbf16>, vector<4x286xbf16>, vector<8x286xf32> -> vector<8x286xf32>
    %37 = arith.addf %32, %36 : vector<8x286xf32>
    %38 = vector.extract_strided_slice %1 {offsets = [0, 37], sizes = [4, 286], strides = [1, 1]} : vector<4x324xbf16> to vector<4x286xbf16>
    %c7 = arith.constant 7 : index
    %c0_24 = arith.constant 0 : index
    %c0_25 = arith.constant 0 : index
    %39 = vector.load %arg2[%c7, %c0_24, %c0_25] : memref<9x8x4xbf16, #tpu.memory_space<vmem>>, vector<1x8x4xbf16>
    %40 = vector.shape_cast %39 : vector<1x8x4xbf16> to vector<8x4xbf16>
    %cst_26 = arith.constant dense<0.000000e+00> : vector<8x286xf32>
    %41 = tpu.matmul %40, %38, %cst_26 {dimension_numbers = #tpu.dot_dimension_numbers<[1], [0], [0], [1], [0, 0, 1, 1], [], []>} : vector<8x4xbf16>, vector<4x286xbf16>, vector<8x286xf32> -> vector<8x286xf32>
    %42 = arith.addf %37, %41 : vector<8x286xf32>
    %43 = vector.extract_strided_slice %1 {offsets = [0, 38], sizes = [4, 286], strides = [1, 1]} : vector<4x324xbf16> to vector<4x286xbf16>
    %c8 = arith.constant 8 : index
    %c0_27 = arith.constant 0 : index
    %c0_28 = arith.constant 0 : index
    %44 = vector.load %arg2[%c8, %c0_27, %c0_28] : memref<9x8x4xbf16, #tpu.memory_space<vmem>>, vector<1x8x4xbf16>
    %45 = vector.shape_cast %44 : vector<1x8x4xbf16> to vector<8x4xbf16>
    %cst_29 = arith.constant dense<0.000000e+00> : vector<8x286xf32>
    %46 = tpu.matmul %45, %43, %cst_29 {dimension_numbers = #tpu.dot_dimension_numbers<[1], [0], [0], [1], [0, 0, 1, 1], [], []>} : vector<8x4xbf16>, vector<4x286xbf16>, vector<8x286xf32> -> vector<8x286xf32>
    %47 = arith.addf %42, %46 : vector<8x286xf32>
    %c0_30 = arith.constant 0 : index
    %c0_31 = arith.constant 0 : index
    %48 = vector.load %arg3[%c0_30, %c0_31] : memref<8x1xf32, #tpu.memory_space<vmem>>, vector<8x1xf32>
    %49 = vector.broadcast %48 : vector<8x1xf32> to vector<8x286xf32>
    %50 = arith.addf %47, %49 : vector<8x286xf32>
    %51 = arith.negf %50 : vector<8x286xf32>
    %52 = math.exp %51 : vector<8x286xf32>
    %cst_32 = arith.constant 1.000000e+00 : f32
    %53 = vector.broadcast %cst_32 : f32 to vector<8x286xf32>
    %54 = arith.addf %53, %52 : vector<8x286xf32>
    %55 = arith.divf %53, %54 : vector<8x286xf32>
    %56 = arith.mulf %50, %55 : vector<8x286xf32>
    %c0_33 = arith.constant 0 : index
    %c0_34 = arith.constant 0 : index
    %c0_35 = arith.constant 0 : index
    %57 = vector.load %arg5[%c0_33, %c0_34, %c0_35] : memref<1x8x286xf32, #tpu.memory_space<vmem>>, vector<1x8x286xf32>
    %58 = vector.shape_cast %57 : vector<1x8x286xf32> to vector<8x286xf32>
    %59 = vector.shape_cast %56 : vector<8x286xf32> to vector<1x8x286xf32>
    tpu.vector_store %arg5[%c0_33, %c0_34, %c0_35], %59 {strides = array<i32>} : memref<1x8x286xf32, #tpu.memory_space<vmem>>, vector<1x8x286xf32>,
    return
  }
  func.func @transform_0(%arg0: i32, %arg1: i32) -> (i32, i32, i32) {
    %c0_i32 = arith.constant 0 : i32
    %c0_i32_0 = arith.constant 0 : i32
    %c0_i32_1 = arith.constant 0 : i32
    return %c0_i32, %arg1, %c0_i32_0 : i32, i32, i32
  }
  func.func @transform_1(%arg0: i32, %arg1: i32) -> (i32, i32) {
    %c0_i32 = arith.constant 0 : i32
    %c0_i32_0 = arith.constant 0 : i32
    return %arg1, %c0_i32 : i32, i32
  }
  func.func @transform_2(%arg0: i32, %arg1: i32) -> (i32, i32, i32) {
    %c0_i32 = arith.constant 0 : i32
    %c0_i32_0 = arith.constant 0 : i32
    %c0_i32_1 = arith.constant 0 : i32
    return %arg0, %c0_i32, %c0_i32_0 : i32, i32, i32
  }
  func.func @transform_3(%arg0: i32, %arg1: i32) -> (i32, i32, i32) {
    %c0_i32 = arith.constant 0 : i32
    %c0_i32_0 = arith.constant 0 : i32
    return %arg0, %arg1, %c0_i32 : i32, i32, i32
  }
}

</mosaic_0001>

<llo_original>
// kernel: base_conv_forward.1
$region0: #{base_conv_forward.1}
  #allocation0 [shape = 'u32[]', space=smem, size = 0x4, offset = 0x4, fixed_abs, tag = 'smem constant byte address 0x4 - core index']
  #allocation1 [shape = 'u32[144,128]{1,0:T(1,128)}', space=vmem, size = 0x12000, scoped, tag = 'internal scratch']
  %s0 = inlined_call_operand.vmem [shape: bf16[9,8,4], index: 0, kind: input, shape index: {}]
  %s1 = inlined_call_operand.vmem [shape: f32[8,1], index: 1, kind: input, shape index: {}]
  %s2 = inlined_call_operand.vmem [shape: bf16[2,4,324], index: 2, kind: input, shape index: {}]
  %s3 = inlined_call_operand.vmem [shape: f32[2,8,286], index: 3, kind: output, shape index: {}]
  %s4 = sld [smem:[#allocation0]]
  $region45: #{base_conv_forward.1} parent=0
    _
  %s6 = ssub.s32 1, %s4
  %s7 = scalar_select 0, %s6, %s4
  loop: start=0, step=1, limit=4
  $region2: #{base_conv_forward.1} parent=0 // loop_pre_header
    _
  $region3: #{base_conv_forward.1} parent=0 // loop_header
    %s9 = sphi 0, %s13
    %p10 = scmp.ge.s32.totalorder %s9, 4
    %s16 = sphi 0, %s28
    %s17 = sphi 0, %s24
    %s18 = sphi 0, %s16
    %s19 = sphi 0, %s17
    %s20 = sphi 0, %s18
    %s21 = sphi 0, %s19
    %s31 = sphi 0, %s33
    %s34 = sphi 0, %s31
    %s35 = sphi 0, %s34
    %s51 = sphi 0, %s35
    %s57 = sphi 0, %s59
    %s60 = sphi 0, %s57
    %s61 = sphi 0, %s60
    %s77 = sphi 0, %s61
    %s83 = sphi 0, %s85
    %s86 = sphi 0, %s83
    %s87 = sphi 0, %s86
    %s103 = sphi 0, %s87
    %s111 = sphi 0, %s113
    %s114 = sphi 0, %s111
    %s115 = sphi 0, %s114
    %s131 = sphi 0, %s115
  $region4: #{base_conv_forward.1} parent=0 // loop_header_branch
    %12 = sbr.rel (%p10) target = $region8
  $region5: #{base_conv_forward.1} parent=0 // loop_body
    %s14 = ssub.s32 %s9, 1
    %s15 = ssub.s32 %s9, 2
    %s22 = sadd.s32 1, %s17
    %p23 = scmp.ge.s32.totalorder %s22, 1
    %s24 = scalar_select %p23, 0, %s22
    %s25 = sadd.s32 1, %s16
    %s26 = scalar_select %p23, %s25, %s16
    %p27 = scmp.ge.s32.totalorder %s26, 2
    %s28 = scalar_select %p27, 0, %s26
    %s29 = ssub.s32 %s17, %s24
    %p30 = scmp.eq.s32.totalorder %s29, 0
    %s32 = sadd.s32 %s31, 1
    %s33 = scalar_select %p30, %s31, %s32
    %p36 = pneg %p30
    %p37 = scmp.eq.s32.totalorder %s9, 1
    %p38 = por %p36, %p37
    %p39 = scmp.ne.s32.totalorder %s31, %s34
    %p40 = scmp.eq.s32.totalorder %s9, 0
    %p41 = por %p39, %p40
    %p42 = scmp.ne.s32.totalorder %s31, %s34
    %p43 = scmp.eq.s32.totalorder %s14, 1
    %p44 = por %p42, %p43
    %p45 = scmp.ne.s32.totalorder %s34, %s35
    %p46 = scmp.eq.s32.totalorder %s14, 0
    %p47 = por %p45, %p46
    %p48 = scmp.ne.s32.totalorder %s34, %s35
    %p49 = scmp.eq.s32.totalorder %s15, 1
    %p50 = por %p48, %p49
    %p52 = scmp.ne.s32.totalorder %s35, %s51
    %p53 = scmp.eq.s32.totalorder %s15, 0
    %p54 = por %p52, %p53
    %s55 = ssub.s32 %s17, %s24
    %p56 = scmp.eq.s32.totalorder %s55, 0
    %s58 = sadd.s32 %s57, 1
    %s59 = scalar_select %p56, %s57, %s58
    %p62 = pneg %p56
    %p63 = scmp.eq.s32.totalorder %s9, 1
    %p64 = por %p62, %p63
    %p65 = scmp.ne.s32.totalorder %s57, %s60
    %p66 = scmp.eq.s32.totalorder %s9, 0
    %p67 = por %p65, %p66
    %p68 = scmp.ne.s32.totalorder %s57, %s60
    %p69 = scmp.eq.s32.totalorder %s14, 1
    %p70 = por %p68, %p69
    %p71 = scmp.ne.s32.totalorder %s60, %s61
    %p72 = scmp.eq.s32.totalorder %s14, 0
    %p73 = por %p71, %p72
    %p74 = scmp.ne.s32.totalorder %s60, %s61
    %p75 = scmp.eq.s32.totalorder %s15, 1
    %p76 = por %p74, %p75
    %p78 = scmp.ne.s32.totalorder %s61, %s77
    %p79 = scmp.eq.s32.totalorder %s15, 0
    %p80 = por %p78, %p79
    %s81 = ssub.s32 %s16, %s28
    %p82 = scmp.eq.s32.totalorder %s81, 0
    %s84 = sadd.s32 %s83, 1
    %s85 = scalar_select %p82, %s83, %s84
    %p88 = pneg %p82
    %p89 = scmp.eq.s32.totalorder %s9, 1
    %p90 = por %p88, %p89
    %p91 = scmp.ne.s32.totalorder %s83, %s86
    %p92 = scmp.eq.s32.totalorder %s9, 0
    %p93 = por %p91, %p92
    %p94 = scmp.ne.s32.totalorder %s83, %s86
    %p95 = scmp.eq.s32.totalorder %s14, 1
    %p96 = por %p94, %p95
    %p97 = scmp.ne.s32.totalorder %s86, %s87
    %p98 = scmp.eq.s32.totalorder %s14, 0
    %p99 = por %p97, %p98
    %p100 = scmp.ne.s32.totalorder %s86, %s87
    %p101 = scmp.eq.s32.totalorder %s15, 1
    %p102 = por %p100, %p101
    %p104 = scmp.ne.s32.totalorder %s87, %s103
    %p105 = scmp.eq.s32.totalorder %s15, 0
    %p106 = por %p104, %p105
    %s107 = ssub.s32 %s16, %s28
    %s108 = ssub.s32 %s17, %s24
    %s109 = sor.u32 %s107, %s108
    %p110 = scmp.eq.s32.totalorder %s109, 0
    %s112 = sadd.s32 %s111, 1
    %s113 = scalar_select %p110, %s111, %s112
    %p116 = pneg %p110
    %p117 = scmp.eq.s32.totalorder %s9, 1
    %p118 = por %p116, %p117
    %p119 = scmp.ne.s32.totalorder %s111, %s114
    %p120 = scmp.eq.s32.totalorder %s9, 0
    %p121 = por %p119, %p120
    %p122 = scmp.ne.s32.totalorder %s111, %s114
    %p123 = scmp.eq.s32.totalorder %s14, 1
    %p124 = por %p122, %p123
    %p125 = scmp.ne.s32.totalorder %s114, %s115
    %p126 = scmp.eq.s32.totalorder %s14, 0
    %p127 = por %p125, %p126
    %p128 = scmp.ne.s32.totalorder %s114, %s115
    %p129 = scmp.eq.s32.totalorder %s15, 1
    %p130 = por %p128, %p129
    %p132 = scmp.ne.s32.totalorder %s115, %s131
    %p133 = scmp.eq.s32.totalorder %s15, 0
    %p134 = por %p132, %p133
    %p135 = scmp.le.s32.totalorder 1, %s9
    %p136 = scmp.lt.s32.totalorder %s9, 3
    %p137 = pnand %p135, %p136
    %p138 = pneg %p137
    // Predicated region
    $region9: #{base_conv_forward.1} parent=5 // pred_check
      _
    $region10: #{base_conv_forward.1} parent=5 // pred_check_branch
      %140 = sbr.rel (%p137) target = $region12
    $region11: #{base_conv_forward.1} parent=5 // pred_region
      %s141 = ssub.s32 %s9, 1
      // Predicated region
      $region13: #{base_conv_forward.1} parent=11 // pred_check
        %p142 = pneg %p47
      $region14: #{base_conv_forward.1} parent=11 // pred_check_branch
        %144 = sbr.rel (%p142) target = $region16
      $region15: #{base_conv_forward.1} parent=11 // pred_region
        %p145 = scmp.lt.s32.totalorder %s19, 0
        %s146 = scalar_select %p145, %s19, 0
        %s147 = smul.addr %s146, 4
        %s148 = scalar_lea.vmem %s0, %s147
      $region16: #{base_conv_forward.1} parent=11 // pred_fallthru
        _
      // Predicated region
      $region17: #{base_conv_forward.1} parent=11 // pred_check
        %p149 = pneg %p73
      $region18: #{base_conv_forward.1} parent=11 // pred_check_branch
        %151 = sbr.rel (%p149) target = $region20
      $region19: #{base_conv_forward.1} parent=11 // pred_region
        %p152 = scmp.lt.s32.totalorder %s19, 0
        %s153 = scalar_select %p152, %s19, 0
        %s154 = smul.addr %s153, 8
        %s155 = scalar_lea.vmem %s1, %s154
      $region20: #{base_conv_forward.1} parent=11 // pred_fallthru
        _
    $region12: #{base_conv_forward.1} parent=5 // pred_fallthru
      _
    %p156 = scmp.lt.s32.totalorder %s9, 2
    // Predicated region
    $region21: #{base_conv_forward.1} parent=5 // pred_check
      %p157 = pneg %p156
    $region22: #{base_conv_forward.1} parent=5 // pred_check_branch
      %159 = sbr.rel (%p157) target = $region24
    $region23: #{base_conv_forward.1} parent=5 // pred_region
      // Predicated region
      $region25: #{base_conv_forward.1} parent=23 // pred_check
        %p160 = pneg %p93
      $region26: #{base_conv_forward.1} parent=23 // pred_check_branch
        %162 = sbr.rel (%p160) target = $region28
      $region27: #{base_conv_forward.1} parent=23 // pred_region
        %p163 = scmp.lt.s32.totalorder %s16, 1
        %s164 = scalar_select %p163, %s16, 1
        %s165 = smul.addr %s164, 3
        %s166 = smul.addr %s165, 2
        %s167 = scalar_lea.vmem %s2, %s166
      $region28: #{base_conv_forward.1} parent=23 // pred_fallthru
        _
    $region24: #{base_conv_forward.1} parent=5 // pred_fallthru
      _
    %p168 = scmp.le.s32.totalorder 1, %s9
    %p169 = scmp.lt.s32.totalorder %s9, 3
    %p170 = pnand %p168, %p169
    %p171 = pneg %p170
    // Predicated region
    $region29: #{base_conv_forward.1} parent=5 // pred_check
      _
    $region30: #{base_conv_forward.1} parent=5 // pred_check_branch
      %173 = sbr.rel (%p170) target = $region32
    $region31: #{base_conv_forward.1} parent=5 // pred_region
      %s174 = ssub.s32 %s9, 1
      %p175 = scmp.lt.s32.totalorder %s19, 0
      %s176 = scalar_select %p175, %s19, 0
      %s177 = smul.addr %s176, 4
      %s178 = scalar_lea.vmem %s0, %s177
      %p179 = pneg %p47
      %p180 = pneg %p44
      %p181 = scmp.lt.s32.totalorder %s19, 0
      %s182 = scalar_select %p181, %s19, 0
      %s183 = smul.addr %s182, 8
      %s184 = scalar_lea.vmem %s1, %s183
      %p185 = pneg %p73
      %p186 = pneg %p70
      %p187 = scmp.lt.s32.totalorder %s18, 1
      %s188 = scalar_select %p187, %s18, 1
      %s189 = smul.addr %s188, 3
      %s190 = smul.addr %s189, 2
      %s191 = scalar_lea.vmem %s2, %s190
      %p192 = pneg %p99
      %p193 = pneg %p96
      %p194 = pneg %p127
      %p195 = pneg %p124
      %p196 = scmp.lt.s32.totalorder %s18, 1
      %s197 = scalar_select %p196, %s18, 1
      %p198 = scmp.lt.s32.totalorder %s19, 0
      %s199 = scalar_select %p198, %s19, 0
      %s200 = smul.addr %s199, 3
      %s201 = smul.addr %s197, 3
      %s202 = sadd.s32 %s200, %s201
      %s203 = smul.addr %s202, 8
      %s204 = scalar_lea.vmem %s3, %s203
      %p205 = scmp.lt.s32.totalorder %s19, 0
      %s206 = scalar_select %p205, %s19, 0
      %s207 = smul.addr %s206, 4
      %s208 = scalar_lea.vmem %s0, %s207
      %p209 = scmp.lt.s32.totalorder %s19, 0
      %s210 = scalar_select %p209, %s19, 0
      %s211 = smul.addr %s210, 8
      %s212 = scalar_lea.vmem %s1, %s211
      %p213 = scmp.lt.s32.totalorder %s18, 1
      %s214 = scalar_select %p213, %s18, 1
      %s215 = smul.addr %s214, 3
      %s216 = smul.addr %s215, 2
      %s217 = scalar_lea.vmem %s2, %s216
      %p218 = scmp.lt.s32.totalorder %s18, 1
      %s219 = scalar_select %p218, %s18, 1
      %p220 = scmp.lt.s32.totalorder %s19, 0
      %s221 = scalar_select %p220, %s19, 0
      %s222 = smul.addr %s221, 3
      %s223 = smul.addr %s219, 3
      %s224 = sadd.s32 %s222, %s223
      %s225 = smul.addr %s224, 8
      %s226 = scalar_lea.vmem %s3, %s225
      %v228 = vld [vmem:[%s217] sm:$0x3f]
      %v229 = vld [vmem:[%s208] sm:$0xf]
      %s230 = scalar_lea.vmem %s208, 4
      %v231 = vld [vmem:[%s230] sm:$0xf]
      %v233 = vcombine.high %v228, %v228
      %v235 = vunpack.c.l.s4 1983009808
      %v236 = vunpack.c.0.s8 %v235
      %v237 = vlaneseq
      %v238 = vshrl.u32 %v237, 7
      %v239 = vsub.s32 %v236, %v238
      %v240 = vrot.slane %v228, %v239
      %v242 = vunpack.c.l.s4 1983009808
      %v243 = vunpack.c.0.s8 %v242
      %v244 = vlaneseq
      %v245 = vshrl.u32 %v244, 7
      %v246 = vsub.s32 %v243, %v245
      %v247 = vrot.slane %v233, %v246
      %v248 = vcombine.high %v240, %v240
      %249 = vrot.lane.b32.xlu0 %v240, 127
      %v250 = vpop.permute.xlu0 %249
      %251 = vrot.lane.b32.xlu0 %v248, 127
      %v252 = vpop.permute.xlu0 %251
      %253 = vrot.lane.b32.xlu0 %v247, 127
      %v254 = vpop.permute.xlu0 %253
      %vm255 = vcmask 1039360
      %v256 = vsel %vm255, %v250, %v252
      %v257 = vsel %vm255, %v252, %v254
      %vm258 = vcmask 31744
      %v260 = vsel %vm258, %v231, 0
      %vm262 = vcmask 1041408
      %v264 = vsel %vm262, %v256, 0
      %v267 = vsel %vm262, %v257, 0
      %v270 = vsel %vm262, %v254, 0
      %272 = vmatprep.subr.bf16.mxu0 %v267
      %273 = vmatpush1.bf16.msra.mxu0 %v264
      %274 = vmatprep.subr.bf16.mxu0 0
      %275 = vmatpush1.bf16.msra.mxu0 0
      %276 = vmatprep.subr.bf16.mxu0 0
      %277 = vmatpush1.bf16.msra.mxu0 0
      %278 = vmatprep.subr.bf16.mxu0 0
      %279 = vmatpush1.bf16.msra.mxu0 0
      %280 = vmatprep.subr.bf16.mxu0 0
      %281 = vmatpush1.bf16.msra.mxu0 0
      %282 = vmatprep.subr.bf16.mxu0 0
      %283 = vmatpush1.bf16.msra.mxu0 0
      %284 = vmatprep.subr.bf16.mxu0 0
      %285 = vmatpush1.bf16.msra.mxu0 0
      %286 = vmatprep.subr.bf16.mxu0 0
      %287 = vmatpush1.bf16.msra.mxu0 0
      %288 = vmatprep.subr.bf16.mxu0 0
      %289 = vmatpush1.bf16.msra.mxu0 0
      %290 = vmatprep.subr.bf16.mxu0 0
      %291 = vmatpush1.bf16.msra.mxu0 0
      %292 = vmatprep.subr.bf16.mxu0 0
      %293 = vmatpush1.bf16.msra.mxu0 0
      %294 = vmatprep.subr.bf16.mxu0 0
      %295 = vmatpush1.bf16.msra.mxu0 0
      %296 = vmatprep.subr.bf16.mxu0 0
      %297 = vmatpush1.bf16.msra.mxu0 0
      %298 = vmatprep.subr.bf16.mxu0 0
      %299 = vmatpush1.bf16.msra.mxu0 0
      %300 = vmatprep.subr.bf16.mxu0 0
      %301 = vmatpush1.bf16.msra.mxu0 0
      %302 = vmatprep.subr.bf16.mxu0 0
      %303 = vmatpush1.bf16.msra.mxu0 0
      %304 = vmatprep.mubr.bf16.mxu0 0
      %305 = vmatmul.mubr.bf16.gmra.mrb[0].mxu0 %v260
      %v306 = vpop.f32.mrb[0].mxu0
      %v307 = vadd.f32 0.0, %v306
      %v308 = vpop.f32.mrb[0].mxu0
      %v309 = vadd.f32 0.0, %v308
      %v310 = vpop.f32.mrb[0].mxu0
      %v311 = vpop.f32.mrb[0].mxu0
      %312 = vdwg.mxu0
      %313 = vmatprep.subr.bf16.mxu0 0
      %314 = vmatpush1.bf16.msra.mxu0 %v270
      %315 = vmatprep.subr.bf16.mxu0 0
      %316 = vmatpush1.bf16.msra.mxu0 0
      %317 = vmatprep.subr.bf16.mxu0 0
      %318 = vmatpush1.bf16.msra.mxu0 0
      %319 = vmatprep.subr.bf16.mxu0 0
      %320 = vmatpush1.bf16.msra.mxu0 0
      %321 = vmatprep.subr.bf16.mxu0 0
      %322 = vmatpush1.bf16.msra.mxu0 0
      %323 = vmatprep.subr.bf16.mxu0 0
      %324 = vmatpush1.bf16.msra.mxu0 0
      %325 = vmatprep.subr.bf16.mxu0 0
      %326 = vmatpush1.bf16.msra.mxu0 0
      %327 = vmatprep.subr.bf16.mxu0 0
      %328 = vmatpush1.bf16.msra.mxu0 0
      %329 = vmatprep.subr.bf16.mxu0 0
      %330 = vmatpush1.bf16.msra.mxu0 0
      %331 = vmatprep.subr.bf16.mxu0 0
      %332 = vmatpush1.bf16.msra.mxu0 0
      %333 = vmatprep.subr.bf16.mxu0 0
      %334 = vmatpush1.bf16.msra.mxu0 0
      %335 = vmatprep.subr.bf16.mxu0 0
      %336 = vmatpush1.bf16.msra.mxu0 0
      %337 = vmatprep.subr.bf16.mxu0 0
      %338 = vmatpush1.bf16.msra.mxu0 0
      %339 = vmatprep.subr.bf16.mxu0 0
      %340 = vmatpush1.bf16.msra.mxu0 0
      %341 = vmatprep.subr.bf16.mxu0 0
      %342 = vmatpush1.bf16.msra.mxu0 0
      %343 = vmatprep.subr.bf16.mxu0 0
      %344 = vmatpush1.bf16.msra.mxu0 0
      %345 = vmatprep.mubr.bf16.mxu0 0
      %346 = vmatmul.mubr.bf16.gmra.mrb[0].mxu0 %v260
      %v347 = vpop.f32.mrb[0].mxu0
      %v348 = vadd.f32 0.0, %v347
      %v349 = vpop.f32.mrb[0].mxu0
      %v350 = vpop.f32.mrb[0].mxu0
      %v351 = vpop.f32.mrb[0].mxu0
      %352 = vdwg.mxu0
      %v354 = vsel %vm258, %v229, 0
      %v357 = vsel %vm262, %v240, 0
      %v360 = vsel %vm262, %v248, 0
      %v363 = vsel %vm262, %v247, 0
      %365 = vmatprep.subr.bf16.mxu0 %v360
      %366 = vmatpush1.bf16.msra.mxu0 %v357
      %367 = vmatprep.subr.bf16.mxu0 0
      %368 = vmatpush1.bf16.msra.mxu0 0
      %369 = vmatprep.subr.bf16.mxu0 0
      %370 = vmatpush1.bf16.msra.mxu0 0
      %371 = vmatprep.subr.bf16.mxu0 0
      %372 = vmatpush1.bf16.msra.mxu0 0
      %373 = vmatprep.subr.bf16.mxu0 0
      %374 = vmatpush1.bf16.msra.mxu0 0
      %375 = vmatprep.subr.bf16.mxu0 0
      %376 = vmatpush1.bf16.msra.mxu0 0
      %377 = vmatprep.subr.bf16.mxu0 0
      %378 = vmatpush1.bf16.msra.mxu0 0
      %379 = vmatprep.subr.bf16.mxu0 0
      %380 = vmatpush1.bf16.msra.mxu0 0
      %381 = vmatprep.subr.bf16.mxu0 0
      %382 = vmatpush1.bf16.msra.mxu0 0
      %383 = vmatprep.subr.bf16.mxu0 0
      %384 = vmatpush1.bf16.msra.mxu0 0
      %385 = vmatprep.subr.bf16.mxu0 0
      %386 = vmatpush1.bf16.msra.mxu0 0
      %387 = vmatprep.subr.bf16.mxu0 0
      %388 = vmatpush1.bf16.msra.mxu0 0
      %389 = vmatprep.subr.bf16.mxu0 0
      %390 = vmatpush1.bf16.msra.mxu0 0
      %391 = vmatprep.subr.bf16.mxu0 0
      %392 = vmatpush1.bf16.msra.mxu0 0
      %393 = vmatprep.subr.bf16.mxu0 0
      %394 = vmatpush1.bf16.msra.mxu0 0
      %395 = vmatprep.subr.bf16.mxu0 0
      %396 = vmatpush1.bf16.msra.mxu0 0
      %397 = vmatprep.mubr.bf16.mxu0 0
      %398 = vmatmul.mubr.bf16.gmra.mrb[0].mxu0 %v354
      %v399 = vpop.f32.mrb[0].mxu0
      %v400 = vadd.f32 %v307, %v399
      %v401 = vpop.f32.mrb[0].mxu0
      %v402 = vadd.f32 %v309, %v401
      %v403 = vpop.f32.mrb[0].mxu0
      %v404 = vpop.f32.mrb[0].mxu0
      %405 = vdwg.mxu0
      %406 = vmatprep.subr.bf16.mxu0 0
      %407 = vmatpush1.bf16.msra.mxu0 %v363
      %408 = vmatprep.subr.bf16.mxu0 0
      %409 = vmatpush1.bf16.msra.mxu0 0
      %410 = vmatprep.subr.bf16.mxu0 0
      %411 = vmatpush1.bf16.msra.mxu0 0
      %412 = vmatprep.subr.bf16.mxu0 0
      %413 = vmatpush1.bf16.msra.mxu0 0
      %414 = vmatprep.subr.bf16.mxu0 0
      %415 = vmatpush1.bf16.msra.mxu0 0
      %416 = vmatprep.subr.bf16.mxu0 0
      %417 = vmatpush1.bf16.msra.mxu0 0
      %418 = vmatprep.subr.bf16.mxu0 0
      %419 = vmatpush1.bf16.msra.mxu0 0
      %420 = vmatprep.subr.bf16.mxu0 0
      %421 = vmatpush1.bf16.msra.mxu0 0
      %422 = vmatprep.subr.bf16.mxu0 0
      %423 = vmatpush1.bf16.msra.mxu0 0
      %424 = vmatprep.subr.bf16.mxu0 0
      %425 = vmatpush1.bf16.msra.mxu0 0
      %426 = vmatprep.subr.bf16.mxu0 0
      %427 = vmatpush1.bf16.msra.mxu0 0
      %428 = vmatprep.subr.bf16.mxu0 0
      %429 = vmatpush1.bf16.msra.mxu0 0
      %430 = vmatprep.subr.bf16.mxu0 0
      %431 = vmatpush1.bf16.msra.mxu0 0
      %432 = vmatprep.subr.bf16.mxu0 0
      %433 = vmatpush1.bf16.msra.mxu0 0
      %434 = vmatprep.subr.bf16.mxu0 0
      %435 = vmatpush1.bf16.msra.mxu0 0
      %436 = vmatprep.subr.bf16.mxu0 0
      %437 = vmatpush1.bf16.msra.mxu0 0
      %438 = vmatprep.mubr.bf16.mxu0 0
      %439 = vmatmul.mubr.bf16.gmra.mrb[0].mxu0 %v354
      %v440 = vpop.f32.mrb[0].mxu0
      %v441 = vadd.f32 %v348, %v440
      %v442 = vpop.f32.mrb[0].mxu0
      %v443 = vpop.f32.mrb[0].mxu0
      %v444 = vpop.f32.mrb[0].mxu0
      %445 = vdwg.mxu0
      %s446 = scalar_lea.vmem %s208, 8
      %v447 = vld [vmem:[%s446] sm:$0xf]
      %448 = vrot.lane.b32.xlu0 %v240, 126
      %v449 = vpop.permute.xlu0 %448
      %450 = vrot.lane.b32.xlu0 %v248, 126
      %v451 = vpop.permute.xlu0 %450
      %452 = vrot.lane.b32.xlu0 %v247, 126
      %v453 = vpop.permute.xlu0 %452
      %vm454 = vcmask 1031168
      %v455 = vsel %vm454, %v449, %v451
      %v456 = vsel %vm454, %v451, %v453
      %v458 = vsel %vm258, %v447, 0
      %v461 = vsel %vm262, %v455, 0
      %v464 = vsel %vm262, %v456, 0
      %v467 = vsel %vm262, %v453, 0
      %469 = vmatprep.subr.bf16.mxu0 %v464
      %470 = vmatpush1.bf16.msra.mxu0 %v461
      %471 = vmatprep.subr.bf16.mxu0 0
      %472 = vmatpush1.bf16.msra.mxu0 0
      %473 = vmatprep.subr.bf16.mxu0 0
      %474 = vmatpush1.bf16.msra.mxu0 0
      %475 = vmatprep.subr.bf16.mxu0 0
      %476 = vmatpush1.bf16.msra.mxu0 0
      %477 = vmatprep.subr.bf16.mxu0 0
      %478 = vmatpush1.bf16.msra.mxu0 0
      %479 = vmatprep.subr.bf16.mxu0 0
      %480 = vmatpush1.bf16.msra.mxu0 0
      %481 = vmatprep.subr.bf16.mxu0 0
      %482 = vmatpush1.bf16.msra.mxu0 0
      %483 = vmatprep.subr.bf16.mxu0 0
      %484 = vmatpush1.bf16.msra.mxu0 0
      %485 = vmatprep.subr.bf16.mxu0 0
      %486 = vmatpush1.bf16.msra.mxu0 0
      %487 = vmatprep.subr.bf16.mxu0 0
      %488 = vmatpush1.bf16.msra.mxu0 0
      %489 = vmatprep.subr.bf16.mxu0 0
      %490 = vmatpush1.bf16.msra.mxu0 0
      %491 = vmatprep.subr.bf16.mxu0 0
      %492 = vmatpush1.bf16.msra.mxu0 0
      %493 = vmatprep.subr.bf16.mxu0 0
      %494 = vmatpush1.bf16.msra.mxu0 0
      %495 = vmatprep.subr.bf16.mxu0 0
      %496 = vmatpush1.bf16.msra.mxu0 0
      %497 = vmatprep.subr.bf16.mxu0 0
      %498 = vmatpush1.bf16.msra.mxu0 0
      %499 = vmatprep.subr.bf16.mxu0 0
      %500 = vmatpush1.bf16.msra.mxu0 0
      %501 = vmatprep.mubr.bf16.mxu0 0
      %502 = vmatmul.mubr.bf16.gmra.mrb[0].mxu0 %v458
      %v503 = vpop.f32.mrb[0].mxu0
      %v504 = vadd.f32 0.0, %v503
      %v505 = vpop.f32.mrb[0].mxu0
      %v506 = vadd.f32 0.0, %v505
      %v507 = vpop.f32.mrb[0].mxu0
      %v508 = vpop.f32.mrb[0].mxu0
      %509 = vdwg.mxu0
      %510 = vmatprep.subr.bf16.mxu0 0
      %511 = vmatpush1.bf16.msra.mxu0 %v467
      %512 = vmatprep.subr.bf16.mxu0 0
      %513 = vmatpush1.bf16.msra.mxu0 0
      %514 = vmatprep.subr.bf16.mxu0 0
      %515 = vmatpush1.bf16.msra.mxu0 0
      %516 = vmatprep.subr.bf16.mxu0 0
      %517 = vmatpush1.bf16.msra.mxu0 0
      %518 = vmatprep.subr.bf16.mxu0 0
      %519 = vmatpush1.bf16.msra.mxu0 0
      %520 = vmatprep.subr.bf16.mxu0 0
      %521 = vmatpush1.bf16.msra.mxu0 0
      %522 = vmatprep.subr.bf16.mxu0 0
      %523 = vmatpush1.bf16.msra.mxu0 0
      %524 = vmatprep.subr.bf16.mxu0 0
      %525 = vmatpush1.bf16.msra.mxu0 0
      %526 = vmatprep.subr.bf16.mxu0 0
      %527 = vmatpush1.bf16.msra.mxu0 0
      %528 = vmatprep.subr.bf16.mxu0 0
      %529 = vmatpush1.bf16.msra.mxu0 0
      %530 = vmatprep.subr.bf16.mxu0 0
      %531 = vmatpush1.bf16.msra.mxu0 0
      %532 = vmatprep.subr.bf16.mxu0 0
      %533 = vmatpush1.bf16.msra.mxu0 0
      %534 = vmatprep.subr.bf16.mxu0 0
      %535 = vmatpush1.bf16.msra.mxu0 0
      %536 = vmatprep.subr.bf16.mxu0 0
      %537 = vmatpush1.bf16.msra.mxu0 0
      %538 = vmatprep.subr.bf16.mxu0 0
      %539 = vmatpush1.bf16.msra.mxu0 0
      %540 = vmatprep.subr.bf16.mxu0 0
      %541 = vmatpush1.bf16.msra.mxu0 0
      %542 = vmatprep.mubr.bf16.mxu0 0
      %543 = vmatmul.mubr.bf16.gmra.mrb[0].mxu0 %v458
      %v544 = vpop.f32.mrb[0].mxu0
      %v545 = vadd.f32 0.0, %v544
      %v546 = vpop.f32.mrb[0].mxu0
      %v547 = vpop.f32.mrb[0].mxu0
      %v548 = vpop.f32.mrb[0].mxu0
      %549 = vdwg.mxu0
      %v550 = vadd.f32 %v400, %v504
      %v551 = vadd.f32 %v402, %v506
      %v552 = vadd.f32 %v441, %v545
      %s553 = scalar_lea.vmem %s208, 12
      %v554 = vld [vmem:[%s553] sm:$0xf]
      %555 = vrot.lane.b32.xlu0 %v240, 110
      %v556 = vpop.permute.xlu0 %555
      %557 = vrot.lane.b32.xlu0 %v248, 110
      %v558 = vpop.permute.xlu0 %557
      %559 = vrot.lane.b32.xlu0 %v247, 110
      %v560 = vpop.permute.xlu0 %559
      %vm561 = vcmask 900096
      %v562 = vsel %vm561, %v556, %v558
      %v563 = vsel %vm561, %v558, %v560
      %v565 = vsel %vm258, %v554, 0
      %v568 = vsel %vm262, %v562, 0
      %v571 = vsel %vm262, %v563, 0
      %v574 = vsel %vm262, %v560, 0
      %576 = vmatprep.subr.bf16.mxu0 %v571
      %577 = vmatpush1.bf16.msra.mxu0 %v568
      %578 = vmatprep.subr.bf16.mxu0 0
      %579 = vmatpush1.bf16.msra.mxu0 0
      %580 = vmatprep.subr.bf16.mxu0 0
      %581 = vmatpush1.bf16.msra.mxu0 0
      %582 = vmatprep.subr.bf16.mxu0 0
      %583 = vmatpush1.bf16.msra.mxu0 0
      %584 = vmatprep.subr.bf16.mxu0 0
      %585 = vmatpush1.bf16.msra.mxu0 0
      %586 = vmatprep.subr.bf16.mxu0 0
      %587 = vmatpush1.bf16.msra.mxu0 0
      %588 = vmatprep.subr.bf16.mxu0 0
      %589 = vmatpush1.bf16.msra.mxu0 0
      %590 = vmatprep.subr.bf16.mxu0 0
      %591 = vmatpush1.bf16.msra.mxu0 0
      %592 = vmatprep.subr.bf16.mxu0 0
      %593 = vmatpush1.bf16.msra.mxu0 0
      %594 = vmatprep.subr.bf16.mxu0 0
      %595 = vmatpush1.bf16.msra.mxu0 0
      %596 = vmatprep.subr.bf16.mxu0 0
      %597 = vmatpush1.bf16.msra.mxu0 0
      %598 = vmatprep.subr.bf16.mxu0 0
      %599 = vmatpush1.bf16.msra.mxu0 0
      %600 = vmatprep.subr.bf16.mxu0 0
      %601 = vmatpush1.bf16.msra.mxu0 0
      %602 = vmatprep.subr.bf16.mxu0 0
      %603 = vmatpush1.bf16.msra.mxu0 0
      %604 = vmatprep.subr.bf16.mxu0 0
      %605 = vmatpush1.bf16.msra.mxu0 0
      %606 = vmatprep.subr.bf16.mxu0 0
      %607 = vmatpush1.bf16.msra.mxu0 0
      %608 = vmatprep.mubr.bf16.mxu0 0
      %609 = vmatmul.mubr.bf16.gmra.mrb[0].mxu0 %v565
      %v610 = vpop.f32.mrb[0].mxu0
      %v611 = vadd.f32 0.0, %v610
      %v612 = vpop.f32.mrb[0].mxu0
      %v613 = vadd.f32 0.0, %v612
      %v614 = vpop.f32.mrb[0].mxu0
      %v615 = vpop.f32.mrb[0].mxu0
      %616 = vdwg.mxu0
      %617 = vmatprep.subr.bf16.mxu0 0
      %618 = vmatpush1.bf16.msra.mxu0 %v574
      %619 = vmatprep.subr.bf16.mxu0 0
      %620 = vmatpush1.bf16.msra.mxu0 0
      %621 = vmatprep.subr.bf16.mxu0 0
      %622 = vmatpush1.bf16.msra.mxu0 0
      %623 = vmatprep.subr.bf16.mxu0 0
      %624 = vmatpush1.bf16.msra.mxu0 0
      %625 = vmatprep.subr.bf16.mxu0 0
      %626 = vmatpush1.bf16.msra.mxu0 0
      %627 = vmatprep.subr.bf16.mxu0 0
      %628 = vmatpush1.bf16.msra.mxu0 0
      %629 = vmatprep.subr.bf16.mxu0 0
      %630 = vmatpush1.bf16.msra.mxu0 0
      %631 = vmatprep.subr.bf16.mxu0 0
      %632 = vmatpush1.bf16.msra.mxu0 0
      %633 = vmatprep.subr.bf16.mxu0 0
      %634 = vmatpush1.bf16.msra.mxu0 0
      %635 = vmatprep.subr.bf16.mxu0 0
      %636 = vmatpush1.bf16.msra.mxu0 0
      %637 = vmatprep.subr.bf16.mxu0 0
      %638 = vmatpush1.bf16.msra.mxu0 0
      %639 = vmatprep.subr.bf16.mxu0 0
      %640 = vmatpush1.bf16.msra.mxu0 0
      %641 = vmatprep.subr.bf16.mxu0 0
      %642 = vmatpush1.bf16.msra.mxu0 0
      %643 = vmatprep.subr.bf16.mxu0 0
      %644 = vmatpush1.bf16.msra.mxu0 0
      %645 = vmatprep.subr.bf16.mxu0 0
      %646 = vmatpush1.bf16.msra.mxu0 0
      %647 = vmatprep.subr.bf16.mxu0 0
      %648 = vmatpush1.bf16.msra.mxu0 0
      %649 = vmatprep.mubr.bf16.mxu0 0
      %650 = vmatmul.mubr.bf16.gmra.mrb[0].mxu0 %v565
      %v651 = vpop.f32.mrb[0].mxu0
      %v652 = vadd.f32 0.0, %v651
      %v653 = vpop.f32.mrb[0].mxu0
      %v654 = vpop.f32.mrb[0].mxu0
      %v655 = vpop.f32.mrb[0].mxu0
      %656 = vdwg.mxu0
      %v657 = vadd.f32 %v550, %v611
      %v658 = vadd.f32 %v551, %v613
      %v659 = vadd.f32 %v552, %v652
      %s660 = scalar_lea.vmem %s208, 16
      %v661 = vld [vmem:[%s660] sm:$0xf]
      %662 = vrot.lane.b32.xlu0 %v240, 109
      %v663 = vpop.permute.xlu0 %662
      %664 = vrot.lane.b32.xlu0 %v248, 109
      %v665 = vpop.permute.xlu0 %664
      %666 = vrot.lane.b32.xlu0 %v247, 109
      %v667 = vpop.permute.xlu0 %666
      %vm668 = vcmask 891904
      %v669 = vsel %vm668, %v663, %v665
      %v670 = vsel %vm668, %v665, %v667
      %v672 = vsel %vm258, %v661, 0
      %v675 = vsel %vm262, %v669, 0
      %v678 = vsel %vm262, %v670, 0
      %v681 = vsel %vm262, %v667, 0
      %683 = vmatprep.subr.bf16.mxu0 %v678
      %684 = vmatpush1.bf16.msra.mxu0 %v675
      %685 = vmatprep.subr.bf16.mxu0 0
      %686 = vmatpush1.bf16.msra.mxu0 0
      %687 = vmatprep.subr.bf16.mxu0 0
      %688 = vmatpush1.bf16.msra.mxu0 0
      %689 = vmatprep.subr.bf16.mxu0 0
      %690 = vmatpush1.bf16.msra.mxu0 0
      %691 = vmatprep.subr.bf16.mxu0 0
      %692 = vmatpush1.bf16.msra.mxu0 0
      %693 = vmatprep.subr.bf16.mxu0 0
      %694 = vmatpush1.bf16.msra.mxu0 0
      %695 = vmatprep.subr.bf16.mxu0 0
      %696 = vmatpush1.bf16.msra.mxu0 0
      %697 = vmatprep.subr.bf16.mxu0 0
      %698 = vmatpush1.bf16.msra.mxu0 0
      %699 = vmatprep.subr.bf16.mxu0 0
      %700 = vmatpush1.bf16.msra.mxu0 0
      %701 = vmatprep.subr.bf16.mxu0 0
      %702 = vmatpush1.bf16.msra.mxu0 0
      %703 = vmatprep.subr.bf16.mxu0 0
      %704 = vmatpush1.bf16.msra.mxu0 0
      %705 = vmatprep.subr.bf16.mxu0 0
      %706 = vmatpush1.bf16.msra.mxu0 0
      %707 = vmatprep.subr.bf16.mxu0 0
      %708 = vmatpush1.bf16.msra.mxu0 0
      %709 = vmatprep.subr.bf16.mxu0 0
      %710 = vmatpush1.bf16.msra.mxu0 0
      %711 = vmatprep.subr.bf16.mxu0 0
      %712 = vmatpush1.bf16.msra.mxu0 0
      %713 = vmatprep.subr.bf16.mxu0 0
      %714 = vmatpush1.bf16.msra.mxu0 0
      %715 = vmatprep.mubr.bf16.mxu0 0
      %716 = vmatmul.mubr.bf16.gmra.mrb[0].mxu0 %v672
      %v717 = vpop.f32.mrb[0].mxu0
      %v718 = vadd.f32 0.0, %v717
      %v719 = vpop.f32.mrb[0].mxu0
      %v720 = vadd.f32 0.0, %v719
      %v721 = vpop.f32.mrb[0].mxu0
      %v722 = vpop.f32.mrb[0].mxu0
      %723 = vdwg.mxu0
      %724 = vmatprep.subr.bf16.mxu0 0
      %725 = vmatpush1.bf16.msra.mxu0 %v681
      %726 = vmatprep.subr.bf16.mxu0 0
      %727 = vmatpush1.bf16.msra.mxu0 0
      %728 = vmatprep.subr.bf16.mxu0 0
      %729 = vmatpush1.bf16.msra.mxu0 0
      %730 = vmatprep.subr.bf16.mxu0 0
      %731 = vmatpush1.bf16.msra.mxu0 0
      %732 = vmatprep.subr.bf16.mxu0 0
      %733 = vmatpush1.bf16.msra.mxu0 0
      %734 = vmatprep.subr.bf16.mxu0 0
      %735 = vmatpush1.bf16.msra.mxu0 0
      %736 = vmatprep.subr.bf16.mxu0 0
      %737 = vmatpush1.bf16.msra.mxu0 0
      %738 = vmatprep.subr.bf16.mxu0 0
      %739 = vmatpush1.bf16.msra.mxu0 0
      %740 = vmatprep.subr.bf16.mxu0 0
      %741 = vmatpush1.bf16.msra.mxu0 0
      %742 = vmatprep.subr.bf16.mxu0 0
      %743 = vmatpush1.bf16.msra.mxu0 0
      %744 = vmatprep.subr.bf16.mxu0 0
      %745 = vmatpush1.bf16.msra.mxu0 0
      %746 = vmatprep.subr.bf16.mxu0 0
      %747 = vmatpush1.bf16.msra.mxu0 0
      %748 = vmatprep.subr.bf16.mxu0 0
      %749 = vmatpush1.bf16.msra.mxu0 0
      %750 = vmatprep.subr.bf16.mxu0 0
      %751 = vmatpush1.bf16.msra.mxu0 0
      %752 = vmatprep.subr.bf16.mxu0 0
      %753 = vmatpush1.bf16.msra.mxu0 0
      %754 = vmatprep.subr.bf16.mxu0 0
      %755 = vmatpush1.bf16.msra.mxu0 0
      %756 = vmatprep.mubr.bf16.mxu0 0
      %757 = vmatmul.mubr.bf16.gmra.mrb[0].mxu0 %v672
      %v758 = vpop.f32.mrb[0].mxu0
      %v759 = vadd.f32 0.0, %v758
      %v760 = vpop.f32.mrb[0].mxu0
      %v761 = vpop.f32.mrb[0].mxu0
      %v762 = vpop.f32.mrb[0].mxu0
      %763 = vdwg.mxu0
      %v764 = vadd.f32 %v657, %v718
      %v765 = vadd.f32 %v658, %v720
      %v766 = vadd.f32 %v659, %v759
      %s767 = scalar_lea.vmem %s208, 20
      %v768 = vld [vmem:[%s767] sm:$0xf]
      %769 = vrot.lane.b32.xlu0 %v240, 108
      %v770 = vpop.permute.xlu0 %769
      %771 = vrot.lane.b32.xlu0 %v248, 108
      %v772 = vpop.permute.xlu0 %771
      %773 = vrot.lane.b32.xlu0 %v247, 108
      %v774 = vpop.permute.xlu0 %773
      %vm775 = vcmask 883712
      %v776 = vsel %vm775, %v770, %v772
      %v777 = vsel %vm775, %v772, %v774
      %v779 = vsel %vm258, %v768, 0
      %v782 = vsel %vm262, %v776, 0
      %v785 = vsel %vm262, %v777, 0
      %v788 = vsel %vm262, %v774, 0
      %790 = vmatprep.subr.bf16.mxu0 %v785
      %791 = vmatpush1.bf16.msra.mxu0 %v782
      %792 = vmatprep.subr.bf16.mxu0 0
      %793 = vmatpush1.bf16.msra.mxu0 0
      %794 = vmatprep.subr.bf16.mxu0 0
      %795 = vmatpush1.bf16.msra.mxu0 0
      %796 = vmatprep.subr.bf16.mxu0 0
      %797 = vmatpush1.bf16.msra.mxu0 0
      %798 = vmatprep.subr.bf16.mxu0 0
      %799 = vmatpush1.bf16.msra.mxu0 0
      %800 = vmatprep.subr.bf16.mxu0 0
      %801 = vmatpush1.bf16.msra.mxu0 0
      %802 = vmatprep.subr.bf16.mxu0 0
      %803 = vmatpush1.bf16.msra.mxu0 0
      %804 = vmatprep.subr.bf16.mxu0 0
      %805 = vmatpush1.bf16.msra.mxu0 0
      %806 = vmatprep.subr.bf16.mxu0 0
      %807 = vmatpush1.bf16.msra.mxu0 0
      %808 = vmatprep.subr.bf16.mxu0 0
      %809 = vmatpush1.bf16.msra.mxu0 0
      %810 = vmatprep.subr.bf16.mxu0 0
      %811 = vmatpush1.bf16.msra.mxu0 0
      %812 = vmatprep.subr.bf16.mxu0 0
      %813 = vmatpush1.bf16.msra.mxu0 0
      %814 = vmatprep.subr.bf16.mxu0 0
      %815 = vmatpush1.bf16.msra.mxu0 0
      %816 = vmatprep.subr.bf16.mxu0 0
      %817 = vmatpush1.bf16.msra.mxu0 0
      %818 = vmatprep.subr.bf16.mxu0 0
      %819 = vmatpush1.bf16.msra.mxu0 0
      %820 = vmatprep.subr.bf16.mxu0 0
      %821 = vmatpush1.bf16.msra.mxu0 0
      %822 = vmatprep.mubr.bf16.mxu0 0
      %823 = vmatmul.mubr.bf16.gmra.mrb[0].mxu0 %v779
      %v824 = vpop.f32.mrb[0].mxu0
      %v825 = vadd.f32 0.0, %v824
      %v826 = vpop.f32.mrb[0].mxu0
      %v827 = vadd.f32 0.0, %v826
      %v828 = vpop.f32.mrb[0].mxu0
      %v829 = vpop.f32.mrb[0].mxu0
      %830 = vdwg.mxu0
      %831 = vmatprep.subr.bf16.mxu0 0
      %832 = vmatpush1.bf16.msra.mxu0 %v788
      %833 = vmatprep.subr.bf16.mxu0 0
      %834 = vmatpush1.bf16.msra.mxu0 0
      %835 = vmatprep.subr.bf16.mxu0 0
      %836 = vmatpush1.bf16.msra.mxu0 0
      %837 = vmatprep.subr.bf16.mxu0 0
      %838 = vmatpush1.bf16.msra.mxu0 0
      %839 = vmatprep.subr.bf16.mxu0 0
      %840 = vmatpush1.bf16.msra.mxu0 0
      %841 = vmatprep.subr.bf16.mxu0 0
      %842 = vmatpush1.bf16.msra.mxu0 0
      %843 = vmatprep.subr.bf16.mxu0 0
      %844 = vmatpush1.bf16.msra.mxu0 0
      %845 = vmatprep.subr.bf16.mxu0 0
      %846 = vmatpush1.bf16.msra.mxu0 0
      %847 = vmatprep.subr.bf16.mxu0 0
      %848 = vmatpush1.bf16.msra.mxu0 0
      %849 = vmatprep.subr.bf16.mxu0 0
      %850 = vmatpush1.bf16.msra.mxu0 0
      %851 = vmatprep.subr.bf16.mxu0 0
      %852 = vmatpush1.bf16.msra.mxu0 0
      %853 = vmatprep.subr.bf16.mxu0 0
      %854 = vmatpush1.bf16.msra.mxu0 0
      %855 = vmatprep.subr.bf16.mxu0 0
      %856 = vmatpush1.bf16.msra.mxu0 0
      %857 = vmatprep.subr.bf16.mxu0 0
      %858 = vmatpush1.bf16.msra.mxu0 0
      %859 = vmatprep.subr.bf16.mxu0 0
      %860 = vmatpush1.bf16.msra.mxu0 0
      %861 = vmatprep.subr.bf16.mxu0 0
      %862 = vmatpush1.bf16.msra.mxu0 0
      %863 = vmatprep.mubr.bf16.mxu0 0
      %864 = vmatmul.mubr.bf16.gmra.mrb[0].mxu0 %v779
      %v865 = vpop.f32.mrb[0].mxu0
      %v866 = vadd.f32 0.0, %v865
      %v867 = vpop.f32.mrb[0].mxu0
      %v868 = vpop.f32.mrb[0].mxu0
      %v869 = vpop.f32.mrb[0].mxu0
      %870 = vdwg.mxu0
      %v871 = vadd.f32 %v764, %v825
      %v872 = vadd.f32 %v765, %v827
      %v873 = vadd.f32 %v766, %v866
      %s874 = scalar_lea.vmem %s208, 24
      %v875 = vld [vmem:[%s874] sm:$0xf]
      %876 = vrot.lane.b32.xlu0 %v240, 92
      %v877 = vpop.permute.xlu0 %876
      %878 = vrot.lane.b32.xlu0 %v248, 92
      %v879 = vpop.permute.xlu0 %878
      %880 = vrot.lane.b32.xlu0 %v247, 92
      %v881 = vpop.permute.xlu0 %880
      %vm882 = vcmask 752640
      %v883 = vsel %vm882, %v877, %v879
      %v884 = vsel %vm882, %v879, %v881
      %v886 = vsel %vm258, %v875, 0
      %v889 = vsel %vm262, %v883, 0
      %v892 = vsel %vm262, %v884, 0
      %v895 = vsel %vm262, %v881, 0
      %897 = vmatprep.subr.bf16.mxu0 %v892
      %898 = vmatpush1.bf16.msra.mxu0 %v889
      %899 = vmatprep.subr.bf16.mxu0 0
      %900 = vmatpush1.bf16.msra.mxu0 0
      %901 = vmatprep.subr.bf16.mxu0 0
      %902 = vmatpush1.bf16.msra.mxu0 0
      %903 = vmatprep.subr.bf16.mxu0 0
      %904 = vmatpush1.bf16.msra.mxu0 0
      %905 = vmatprep.subr.bf16.mxu0 0
      %906 = vmatpush1.bf16.msra.mxu0 0
      %907 = vmatprep.subr.bf16.mxu0 0
      %908 = vmatpush1.bf16.msra.mxu0 0
      %909 = vmatprep.subr.bf16.mxu0 0
      %910 = vmatpush1.bf16.msra.mxu0 0
      %911 = vmatprep.subr.bf16.mxu0 0
      %912 = vmatpush1.bf16.msra.mxu0 0
      %913 = vmatprep.subr.bf16.mxu0 0
      %914 = vmatpush1.bf16.msra.mxu0 0
      %915 = vmatprep.subr.bf16.mxu0 0
      %916 = vmatpush1.bf16.msra.mxu0 0
      %917 = vmatprep.subr.bf16.mxu0 0
      %918 = vmatpush1.bf16.msra.mxu0 0
      %919 = vmatprep.subr.bf16.mxu0 0
      %920 = vmatpush1.bf16.msra.mxu0 0
      %921 = vmatprep.subr.bf16.mxu0 0
      %922 = vmatpush1.bf16.msra.mxu0 0
      %923 = vmatprep.subr.bf16.mxu0 0
      %924 = vmatpush1.bf16.msra.mxu0 0
      %925 = vmatprep.subr.bf16.mxu0 0
      %926 = vmatpush1.bf16.msra.mxu0 0
      %927 = vmatprep.subr.bf16.mxu0 0
      %928 = vmatpush1.bf16.msra.mxu0 0
      %929 = vmatprep.mubr.bf16.mxu0 0
      %930 = vmatmul.mubr.bf16.gmra.mrb[0].mxu0 %v886
      %v931 = vpop.f32.mrb[0].mxu0
      %v932 = vadd.f32 0.0, %v931
      %v933 = vpop.f32.mrb[0].mxu0
      %v934 = vadd.f32 0.0, %v933
      %v935 = vpop.f32.mrb[0].mxu0
      %v936 = vpop.f32.mrb[0].mxu0
      %937 = vdwg.mxu0
      %938 = vmatprep.subr.bf16.mxu0 0
      %939 = vmatpush1.bf16.msra.mxu0 %v895
      %940 = vmatprep.subr.bf16.mxu0 0
      %941 = vmatpush1.bf16.msra.mxu0 0
      %942 = vmatprep.subr.bf16.mxu0 0
      %943 = vmatpush1.bf16.msra.mxu0 0
      %944 = vmatprep.subr.bf16.mxu0 0
      %945 = vmatpush1.bf16.msra.mxu0 0
      %946 = vmatprep.subr.bf16.mxu0 0
      %947 = vmatpush1.bf16.msra.mxu0 0
      %948 = vmatprep.subr.bf16.mxu0 0
      %949 = vmatpush1.bf16.msra.mxu0 0
      %950 = vmatprep.subr.bf16.mxu0 0
      %951 = vmatpush1.bf16.msra.mxu0 0
      %952 = vmatprep.subr.bf16.mxu0 0
      %953 = vmatpush1.bf16.msra.mxu0 0
      %954 = vmatprep.subr.bf16.mxu0 0
      %955 = vmatpush1.bf16.msra.mxu0 0
      %956 = vmatprep.subr.bf16.mxu0 0
      %957 = vmatpush1.bf16.msra.mxu0 0
      %958 = vmatprep.subr.bf16.mxu0 0
      %959 = vmatpush1.bf16.msra.mxu0 0
      %960 = vmatprep.subr.bf16.mxu0 0
      %961 = vmatpush1.bf16.msra.mxu0 0
      %962 = vmatprep.subr.bf16.mxu0 0
      %963 = vmatpush1.bf16.msra.mxu0 0
      %964 = vmatprep.subr.bf16.mxu0 0
      %965 = vmatpush1.bf16.msra.mxu0 0
      %966 = vmatprep.subr.bf16.mxu0 0
      %967 = vmatpush1.bf16.msra.mxu0 0
      %968 = vmatprep.subr.bf16.mxu0 0
      %969 = vmatpush1.bf16.msra.mxu0 0
      %970 = vmatprep.mubr.bf16.mxu0 0
      %971 = vmatmul.mubr.bf16.gmra.mrb[0].mxu0 %v886
      %v972 = vpop.f32.mrb[0].mxu0
      %v973 = vadd.f32 0.0, %v972
      %v974 = vpop.f32.mrb[0].mxu0
      %v975 = vpop.f32.mrb[0].mxu0
      %v976 = vpop.f32.mrb[0].mxu0
      %977 = vdwg.mxu0
      %v978 = vadd.f32 %v871, %v932
      %v979 = vadd.f32 %v872, %v934
      %v980 = vadd.f32 %v873, %v973
      %s981 = scalar_lea.vmem %s208, 28
      %v982 = vld [vmem:[%s981] sm:$0xf]
      %983 = vrot.lane.b32.xlu0 %v240, 91
      %v984 = vpop.permute.xlu0 %983
      %985 = vrot.lane.b32.xlu0 %v248, 91
      %v986 = vpop.permute.xlu0 %985
      %987 = vrot.lane.b32.xlu0 %v247, 91
      %v988 = vpop.permute.xlu0 %987
      %vm989 = vcmask 744448
      %v990 = vsel %vm989, %v984, %v986
      %v991 = vsel %vm989, %v986, %v988
      %v993 = vsel %vm258, %v982, 0
      %v996 = vsel %vm262, %v990, 0
      %v999 = vsel %vm262, %v991, 0
      %v1002 = vsel %vm262, %v988, 0
      %1004 = vmatprep.subr.bf16.mxu0 %v999
      %1005 = vmatpush1.bf16.msra.mxu0 %v996
      %1006 = vmatprep.subr.bf16.mxu0 0
      %1007 = vmatpush1.bf16.msra.mxu0 0
      %1008 = vmatprep.subr.bf16.mxu0 0
      %1009 = vmatpush1.bf16.msra.mxu0 0
      %1010 = vmatprep.subr.bf16.mxu0 0
      %1011 = vmatpush1.bf16.msra.mxu0 0
      %1012 = vmatprep.subr.bf16.mxu0 0
      %1013 = vmatpush1.bf16.msra.mxu0 0
      %1014 = vmatprep.subr.bf16.mxu0 0
      %1015 = vmatpush1.bf16.msra.mxu0 0
      %1016 = vmatprep.subr.bf16.mxu0 0
      %1017 = vmatpush1.bf16.msra.mxu0 0
      %1018 = vmatprep.subr.bf16.mxu0 0
      %1019 = vmatpush1.bf16.msra.mxu0 0
      %1020 = vmatprep.subr.bf16.mxu0 0
      %1021 = vmatpush1.bf16.msra.mxu0 0
      %1022 = vmatprep.subr.bf16.mxu0 0
      %1023 = vmatpush1.bf16.msra.mxu0 0
      %1024 = vmatprep.subr.bf16.mxu0 0
      %1025 = vmatpush1.bf16.msra.mxu0 0
      %1026 = vmatprep.subr.bf16.mxu0 0
      %1027 = vmatpush1.bf16.msra.mxu0 0
      %1028 = vmatprep.subr.bf16.mxu0 0
      %1029 = vmatpush1.bf16.msra.mxu0 0
      %1030 = vmatprep.subr.bf16.mxu0 0
      %1031 = vmatpush1.bf16.msra.mxu0 0
      %1032 = vmatprep.subr.bf16.mxu0 0
      %1033 = vmatpush1.bf16.msra.mxu0 0
      %1034 = vmatprep.subr.bf16.mxu0 0
      %1035 = vmatpush1.bf16.msra.mxu0 0
      %1036 = vmatprep.mubr.bf16.mxu0 0
      %1037 = vmatmul.mubr.bf16.gmra.mrb[0].mxu0 %v993
      %v1038 = vpop.f32.mrb[0].mxu0
      %v1039 = vadd.f32 0.0, %v1038
      %v1040 = vpop.f32.mrb[0].mxu0
      %v1041 = vadd.f32 0.0, %v1040
      %v1042 = vpop.f32.mrb[0].mxu0
      %v1043 = vpop.f32.mrb[0].mxu0
      %1044 = vdwg.mxu0
      %1045 = vmatprep.subr.bf16.mxu0 0
      %1046 = vmatpush1.bf16.msra.mxu0 %v1002
      %1047 = vmatprep.subr.bf16.mxu0 0
      %1048 = vmatpush1.bf16.msra.mxu0 0
      %1049 = vmatprep.subr.bf16.mxu0 0
      %1050 = vmatpush1.bf16.msra.mxu0 0
      %1051 = vmatprep.subr.bf16.mxu0 0
      %1052 = vmatpush1.bf16.msra.mxu0 0
      %1053 = vmatprep.subr.bf16.mxu0 0
      %1054 = vmatpush1.bf16.msra.mxu0 0
      %1055 = vmatprep.subr.bf16.mxu0 0
      %1056 = vmatpush1.bf16.msra.mxu0 0
      %1057 = vmatprep.subr.bf16.mxu0 0
      %1058 = vmatpush1.bf16.msra.mxu0 0
      %1059 = vmatprep.subr.bf16.mxu0 0
      %1060 = vmatpush1.bf16.msra.mxu0 0
      %1061 = vmatprep.subr.bf16.mxu0 0
      %1062 = vmatpush1.bf16.msra.mxu0 0
      %1063 = vmatprep.subr.bf16.mxu0 0
      %1064 = vmatpush1.bf16.msra.mxu0 0
      %1065 = vmatprep.subr.bf16.mxu0 0
      %1066 = vmatpush1.bf16.msra.mxu0 0
      %1067 = vmatprep.subr.bf16.mxu0 0
      %1068 = vmatpush1.bf16.msra.mxu0 0
      %1069 = vmatprep.subr.bf16.mxu0 0
      %1070 = vmatpush1.bf16.msra.mxu0 0
      %1071 = vmatprep.subr.bf16.mxu0 0
      %1072 = vmatpush1.bf16.msra.mxu0 0
      %1073 = vmatprep.subr.bf16.mxu0 0
      %1074 = vmatpush1.bf16.msra.mxu0 0
      %1075 = vmatprep.subr.bf16.mxu0 0
      %1076 = vmatpush1.bf16.msra.mxu0 0
      %1077 = vmatprep.mubr.bf16.mxu0 0
      %1078 = vmatmul.mubr.bf16.gmra.mrb[0].mxu0 %v993
      %v1079 = vpop.f32.mrb[0].mxu0
      %v1080 = vadd.f32 0.0, %v1079
      %v1081 = vpop.f32.mrb[0].mxu0
      %v1082 = vpop.f32.mrb[0].mxu0
      %v1083 = vpop.f32.mrb[0].mxu0
      %1084 = vdwg.mxu0
      %v1085 = vadd.f32 %v978, %v1039
      %v1086 = vadd.f32 %v979, %v1041
      %v1087 = vadd.f32 %v980, %v1080
      %s1088 = scalar_lea.vmem %s208, 32
      %v1089 = vld [vmem:[%s1088] sm:$0xf]
      %1090 = vrot.lane.b32.xlu0 %v240, 90
      %v1091 = vpop.permute.xlu0 %1090
      %1092 = vrot.lane.b32.xlu0 %v248, 90
      %v1093 = vpop.permute.xlu0 %1092
      %1094 = vrot.lane.b32.xlu0 %v247, 90
      %v1095 = vpop.permute.xlu0 %1094
      %vm1096 = vcmask 736256
      %v1097 = vsel %vm1096, %v1091, %v1093
      %v1098 = vsel %vm1096, %v1093, %v1095
      %v1100 = vsel %vm258, %v1089, 0
      %v1103 = vsel %vm262, %v1097, 0
      %v1106 = vsel %vm262, %v1098, 0
      %v1109 = vsel %vm262, %v1095, 0
      %1111 = vmatprep.subr.bf16.mxu0 %v1106
      %1112 = vmatpush1.bf16.msra.mxu0 %v1103
      %1113 = vmatprep.subr.bf16.mxu0 0
      %1114 = vmatpush1.bf16.msra.mxu0 0
      %1115 = vmatprep.subr.bf16.mxu0 0
      %1116 = vmatpush1.bf16.msra.mxu0 0
      %1117 = vmatprep.subr.bf16.mxu0 0
      %1118 = vmatpush1.bf16.msra.mxu0 0
      %1119 = vmatprep.subr.bf16.mxu0 0
      %1120 = vmatpush1.bf16.msra.mxu0 0
      %1121 = vmatprep.subr.bf16.mxu0 0
      %1122 = vmatpush1.bf16.msra.mxu0 0
      %1123 = vmatprep.subr.bf16.mxu0 0
      %1124 = vmatpush1.bf16.msra.mxu0 0
      %1125 = vmatprep.subr.bf16.mxu0 0
      %1126 = vmatpush1.bf16.msra.mxu0 0
      %1127 = vmatprep.subr.bf16.mxu0 0
      %1128 = vmatpush1.bf16.msra.mxu0 0
      %1129 = vmatprep.subr.bf16.mxu0 0
      %1130 = vmatpush1.bf16.msra.mxu0 0
      %1131 = vmatprep.subr.bf16.mxu0 0
      %1132 = vmatpush1.bf16.msra.mxu0 0
      %1133 = vmatprep.subr.bf16.mxu0 0
      %1134 = vmatpush1.bf16.msra.mxu0 0
      %1135 = vmatprep.subr.bf16.mxu0 0
      %1136 = vmatpush1.bf16.msra.mxu0 0
      %1137 = vmatprep.subr.bf16.mxu0 0
      %1138 = vmatpush1.bf16.msra.mxu0 0
      %1139 = vmatprep.subr.bf16.mxu0 0
      %1140 = vmatpush1.bf16.msra.mxu0 0
      %1141 = vmatprep.subr.bf16.mxu0 0
      %1142 = vmatpush1.bf16.msra.mxu0 0
      %1143 = vmatprep.mubr.bf16.mxu0 0
      %1144 = vmatmul.mubr.bf16.gmra.mrb[0].mxu0 %v1100
      %v1145 = vpop.f32.mrb[0].mxu0
      %v1146 = vadd.f32 0.0, %v1145
      %v1147 = vpop.f32.mrb[0].mxu0
      %v1148 = vadd.f32 0.0, %v1147
      %v1149 = vpop.f32.mrb[0].mxu0
      %v1150 = vpop.f32.mrb[0].mxu0
      %1151 = vdwg.mxu0
      %1152 = vmatprep.subr.bf16.mxu0 0
      %1153 = vmatpush1.bf16.msra.mxu0 %v1109
      %1154 = vmatprep.subr.bf16.mxu0 0
      %1155 = vmatpush1.bf16.msra.mxu0 0
      %1156 = vmatprep.subr.bf16.mxu0 0
      %1157 = vmatpush1.bf16.msra.mxu0 0
      %1158 = vmatprep.subr.bf16.mxu0 0
      %1159 = vmatpush1.bf16.msra.mxu0 0
      %1160 = vmatprep.subr.bf16.mxu0 0
      %1161 = vmatpush1.bf16.msra.mxu0 0
      %1162 = vmatprep.subr.bf16.mxu0 0
      %1163 = vmatpush1.bf16.msra.mxu0 0
      %1164 = vmatprep.subr.bf16.mxu0 0
      %1165 = vmatpush1.bf16.msra.mxu0 0
      %1166 = vmatprep.subr.bf16.mxu0 0
      %1167 = vmatpush1.bf16.msra.mxu0 0
      %1168 = vmatprep.subr.bf16.mxu0 0
      %1169 = vmatpush1.bf16.msra.mxu0 0
      %1170 = vmatprep.subr.bf16.mxu0 0
      %1171 = vmatpush1.bf16.msra.mxu0 0
      %1172 = vmatprep.subr.bf16.mxu0 0
      %1173 = vmatpush1.bf16.msra.mxu0 0
      %1174 = vmatprep.subr.bf16.mxu0 0
      %1175 = vmatpush1.bf16.msra.mxu0 0
      %1176 = vmatprep.subr.bf16.mxu0 0
      %1177 = vmatpush1.bf16.msra.mxu0 0
      %1178 = vmatprep.subr.bf16.mxu0 0
      %1179 = vmatpush1.bf16.msra.mxu0 0
      %1180 = vmatprep.subr.bf16.mxu0 0
      %1181 = vmatpush1.bf16.msra.mxu0 0
      %1182 = vmatprep.subr.bf16.mxu0 0
      %1183 = vmatpush1.bf16.msra.mxu0 0
      %1184 = vmatprep.mubr.bf16.mxu0 0
      %1185 = vmatmul.mubr.bf16.gmra.mrb[0].mxu0 %v1100
      %v1186 = vpop.f32.mrb[0].mxu0
      %v1187 = vadd.f32 0.0, %v1186
      %v1188 = vpop.f32.mrb[0].mxu0
      %v1189 = vpop.f32.mrb[0].mxu0
      %v1190 = vpop.f32.mrb[0].mxu0
      %1191 = vdwg.mxu0
      %v1192 = vadd.f32 %v1085, %v1146
      %v1193 = vadd.f32 %v1086, %v1148
      %v1194 = vadd.f32 %v1087, %v1187
      %v1195 = vld [vmem:[%s212] sm:$0xff]
      %1197 = vset.pattern.permute.xlu0 0
      %1198 = vperm.xlu0 %1197, %v1195
      %v1199 = vpop.permute.xlu0 %1198
      %v1201 = vadd.f32 %v1192, %v1199
      %v1202 = vadd.f32 %v1193, %v1199
      %v1203 = vadd.f32 %v1194, %v1199
      %v1204 = vxor.u32 %v1201, 2147483648
      %v1205 = vxor.u32 %v1202, 2147483648
      %v1206 = vxor.u32 %v1203, 2147483648
      %v1207 = vmul.f32 %v1204, 1.442695
      %v1208 = vpow.pop %v1207
      %v1209 = vmul.f32 %v1205, 1.442695
      %v1210 = vpow.pop %v1209
      %v1211 = vmul.f32 %v1206, 1.442695
      %v1212 = vpow.pop %v1211
      %v1213 = vadd.f32 %v1208, 1.0
      %v1214 = vadd.f32 %v1210, 1.0
      %v1215 = vadd.f32 %v1212, 1.0
      %v1216 = vrcp.pop %v1213
      %v1217 = vmul.f32 1.0, %v1216
      %v1218 = vrcp.pop %v1214
      %v1219 = vmul.f32 1.0, %v1218
      %v1220 = vrcp.pop %v1215
      %v1221 = vmul.f32 1.0, %v1220
      %v1222 = vmul.f32 %v1201, %v1217
      %v1223 = vmul.f32 %v1202, %v1219
      %v1224 = vmul.f32 %v1203, %v1221
      %1225 = vst [vmem:[%s226] sm:$0xff] %v1222
      %1226 = vst [vmem:[%s226 + $0x8] sm:$0xff] %v1223
      %vm1227 = vcmask 244736
      %1228 = vst.msk [vmem:[%s226 + $0x10] sm:$0xff] %vm1227, %v1224
      %p1229 = scmp.lt.s32.totalorder %s18, 1
      %s1230 = scalar_select %p1229, %s18, 1
      %p1231 = scmp.lt.s32.totalorder %s19, 0
      %s1232 = scalar_select %p1231, %s19, 0
      %s1233 = smul.addr %s1232, 3
      %s1234 = smul.addr %s1230, 3
      %s1235 = sadd.s32 %s1233, %s1234
      %s1236 = smul.addr %s1235, 8
      %s1237 = scalar_lea.vmem %s3, %s1236
      // Predicated region
      $region33: #{base_conv_forward.1} parent=31 // pred_check
        %p1238 = pneg %p124
      $region34: #{base_conv_forward.1} parent=31 // pred_check_branch
        %1240 = sbr.rel (%p1238) target = $region36
      $region35: #{base_conv_forward.1} parent=31 // pred_region
        _
      $region36: #{base_conv_forward.1} parent=31 // pred_fallthru
        _
    $region32: #{base_conv_forward.1} parent=5 // pred_fallthru
      _
    %p1241 = scmp.le.s32.totalorder 2, %s9
    // Predicated region
    $region37: #{base_conv_forward.1} parent=5 // pred_check
      %p1242 = pneg %p1241
    $region38: #{base_conv_forward.1} parent=5 // pred_check_branch
      %1244 = sbr.rel (%p1242) target = $region40
    $region39: #{base_conv_forward.1} parent=5 // pred_region
      %s1245 = ssub.s32 %s9, 2
      // Predicated region
      $region41: #{base_conv_forward.1} parent=39 // pred_check
        %p1246 = pneg %p130
      $region42: #{base_conv_forward.1} parent=39 // pred_check_branch
        %1248 = sbr.rel (%p1246) target = $region44
      $region43: #{base_conv_forward.1} parent=39 // pred_region
        %p1249 = scmp.lt.s32.totalorder %s20, 1
        %s1250 = scalar_select %p1249, %s20, 1
        %p1251 = scmp.lt.s32.totalorder %s21, 0
        %s1252 = scalar_select %p1251, %s21, 0
        %s1253 = smul.addr %s1252, 3
        %s1254 = smul.addr %s1250, 3
        %s1255 = sadd.s32 %s1253, %s1254
        %s1256 = smul.addr %s1255, 8
        %s1257 = scalar_lea.vmem %s3, %s1256
      $region44: #{base_conv_forward.1} parent=39 // pred_fallthru
        _
    $region40: #{base_conv_forward.1} parent=5 // pred_fallthru
      _
  $region6: #{base_conv_forward.1} parent=0 // loop_footer
    %s13 = sadd.s32 1, %s9
  $region7: #{base_conv_forward.1} parent=0 // loop_footer_branch
    %8 = sbr.rel target = $region3
  $region8: #{base_conv_forward.1} parent=0 // loop_exit
    _

</llo_original>
